<compile_context>
chip_gen: v7x
topology: tpu7x:2x2x1
jax: 0.10.0
libtpu: 0.0.40
codegen_flags: <defaults>
</compile_context>

<pallas_src>
import jax
import jax.numpy as jnp
from jax.experimental import pallas as pl
from jax.experimental.pallas import tpu as pltpu

MF_DIM = 32
NN_DIM = 64
H1, H2, H3 = 128, 64, 32

# Max batch tile. Sweep 512/1024/2048 when tuning. VMEM at TB=2048 is ~3-4 MiB
# (double-buffered bf16 inputs + f32 intermediates) -> fits v5e's 16 MiB scoped
# default and v7x's 64 MiB physical VMEM; no vmem_limit_bytes override needed.
# TODO(synk): if TB is ever pushed >= 4096, set vmem_limit_bytes on v5e explicitly.
TB_MAX = 2048


def _round_up(x, m):
    return ((x + m - 1) // m) * m


def neumf_kernel(mf_u_ref, mf_i_ref, nn_u_ref, nn_i_ref,
                 w1a_ref, w1b_ref, b1_ref,
                 w2_ref, b2_ref,
                 w3_ref, b3_ref,
                 wn_mf_ref, wn_h_ref, bn_ref,
                 out_ref):
    f32 = jnp.float32
    bf16 = jnp.bfloat16

    # GMF branch: elementwise product, upcast to f32 (v5e VPU has no bf16 path).
    mf_x = mf_u_ref[...].astype(f32) * mf_i_ref[...].astype(f32)             # (TB, 32)

    # MLP branch. fc1 is a split matmul so concat([nn_u, nn_i]) is never materialized:
    #   h = nn_u @ w1a + nn_i @ w1b + b1
    # TODO(synk): on v5e a single K=128 fc1 matmul on a pre-fused (B,128) gather would
    # halve MXU pushes -- only worth it if XLA fuses gather+concat without an HBM copy.
    h = (jnp.dot(nn_u_ref[...], w1a_ref[...], preferred_element_type=f32)
         + jnp.dot(nn_i_ref[...], w1b_ref[...], preferred_element_type=f32)
         + b1_ref[...])
    h = jnp.maximum(h, 0.0)                                                  # (TB, 128)
    # TODO(synk): nn.Dropout(0.5) is identity in eval/inference mode, so it is omitted.
    h = jnp.dot(h.astype(bf16), w2_ref[...], preferred_element_type=f32) + b2_ref[...]
    h = jnp.maximum(h, 0.0)                                                  # (TB, 64)
    h = jnp.dot(h.astype(bf16), w3_ref[...], preferred_element_type=f32) + b3_ref[...]
    h = jnp.maximum(h, 0.0)                                                  # (TB, 32)

    # NeuMF head: concat(GMF, MLP) @ wn + bn rewritten with wn split in halves,
    # as a VPU multiply + lane reduction (no concat relayout, no N=1 MXU matmul).
    res = jnp.sum(mf_x * wn_mf_ref[...] + h * wn_h_ref[...], axis=-1) + bn_ref[0]  # (TB,)

    # Aligned, lane-dense output: (1, 8, TB//8) slab per grid step (for TB>=1024 this
    # is a full (8,128)-aligned tile -> unmasked vst).
    out_ref[...] = res.reshape(out_ref.shape)


def sopred_forward(user, item, params):
    """Embedding gathers stay in XLA; GMF + MLP + NeuMF head fused into one Pallas kernel."""
    # TODO(synk): embedding gathers could be fused into the kernel (PrefetchScalarGridSpec
    # + coalesced DMA gather) to cut HBM traffic further; per-row 64-128 B DMAs are
    # descriptor-overhead-bound for random indices, so the XLA gather is kept.
    B = user.shape[0]

    # Batch tile: large tiles amortize per-grid-step overhead; for smaller batches split
    # into ~two equal tiles so both v7x TensorCores get work on the "parallel" grid axis.
    if B >= 2 * TB_MAX:
        tb = TB_MAX
    else:
        tb = max(8, _round_up(-(-B // 2), 8))
    b_pad = _round_up(B, tb)
    num_tiles = b_pad // tb

    if b_pad != B:
        pad = b_pad - B
        user = jnp.concatenate([user, jnp.zeros((pad,), user.dtype)])
        item = jnp.concatenate([item, jnp.zeros((pad,), item.dtype)])

    # Gather embedding rows (tables stored in bf16: halves HBM traffic of the gathers).
    # TODO(synk): fp8/int8 tables with per-table scales would further halve gather bytes.
    mf_u = params["mf_usr_emb"][user]                 # (b_pad, 32) bf16
    mf_i = params["mf_item_emb"][item]                # (b_pad, 32) bf16
    nn_u = params["nn_usr_emb"][user]                 # (b_pad, 64) bf16
    nn_i = params["nn_item_emb"][item]                # (b_pad, 64) bf16

    # TODO(synk): on v5e, if xprof shows exposed input DMA at large tb, add
    # pipeline_mode=pl.Buffered(3) to the four embedding bspecs.
    bspec = lambda d: pl.BlockSpec((tb, d), lambda i: (i, 0))      # batch-streamed inputs
    wspec = lambda r, c: pl.BlockSpec((r, c), lambda i: (0, 0))    # weights: constant block

    out = pl.pallas_call(
        neumf_kernel,
        out_shape=jax.ShapeDtypeStruct((num_tiles, 8, tb // 8), jnp.float32),
        grid=(num_tiles,),
        in_specs=[
            bspec(MF_DIM), bspec(MF_DIM), bspec(NN_DIM), bspec(NN_DIM),
            wspec(NN_DIM, H1), wspec(NN_DIM, H1), wspec(1, H1),
            wspec(H1, H2), wspec(1, H2),
            wspec(H2, H3), wspec(1, H3),
            wspec(1, H3), wspec(1, H3),
            pl.BlockSpec(memory_space=pltpu.MemorySpace.SMEM),     # bn scalar
        ],
        out_specs=pl.BlockSpec((1, 8, tb // 8), lambda i: (i, 0, 0)),
        compiler_params=pltpu.CompilerParams(dimension_semantics=("parallel",)),
    )(
        mf_u, mf_i, nn_u, nn_i,
        params["w1a"], params["w1b"], params["b1"],
        params["w2"], params["b2"],
        params["w3"], params["b3"],
        params["wn_mf"], params["wn_h"], params["bn"],
    )
    return out.reshape(-1)[:B]   # matches torch .squeeze() -> (B,)


def init_params(key, num_users, num_items):
    ks = jax.random.split(key, 12)
    f32, bf16 = jnp.float32, jnp.bfloat16

    def lin(kw, kb, fan_in, fan_out):
        # torch.nn.Linear default: U(-1/sqrt(in), 1/sqrt(in)); stored as (in, out).
        bound = 1.0 / float(fan_in) ** 0.5
        w = jax.random.uniform(kw, (fan_in, fan_out), f32, -bound, bound)
        b = jax.random.uniform(kb, (1, fan_out), f32, -bound, bound)
        return w, b

    params = {
        "mf_usr_emb": jax.random.normal(ks[0], (num_users, MF_DIM), f32).astype(bf16),
        "mf_item_emb": jax.random.normal(ks[1], (num_items, MF_DIM), f32).astype(bf16),
        "nn_usr_emb": jax.random.normal(ks[2], (num_users, NN_DIM), f32).astype(bf16),
        "nn_item_emb": jax.random.normal(ks[3], (num_items, NN_DIM), f32).astype(bf16),
    }
    w1, b1 = lin(ks[4], ks[5], 2 * NN_DIM, H1)
    w2, b2 = lin(ks[6], ks[7], H1, H2)
    w3, b3 = lin(ks[8], ks[9], H2, H3)
    wn, bn = lin(ks[10], ks[11], MF_DIM + H3, 1)

    # fc1 split by input half (user-emb rows / item-emb rows) -> kernel never concats.
    params["w1a"] = w1[:NN_DIM].astype(bf16)            # (64, 128)
    params["w1b"] = w1[NN_DIM:].astype(bf16)            # (64, 128)
    params["b1"] = b1                                   # (1, 128) f32
    params["w2"] = w2.astype(bf16)                      # (128, 64)
    params["b2"] = b2                                   # (1, 64)  f32
    params["w3"] = w3.astype(bf16)                      # (64, 32)
    params["b3"] = b3                                   # (1, 32)  f32
    # NeuMF head split: rows 0:32 multiply the GMF half, rows 32:64 the MLP half.
    params["wn_mf"] = wn[:MF_DIM].T                     # (1, 32) f32
    params["wn_h"] = wn[MF_DIM:].T                      # (1, 32) f32
    params["bn"] = bn.reshape(1)                        # (1,)    f32 -> SMEM scalar
    return params


if __name__ == "__main__":
    key = jax.random.PRNGKey(0)
    k_param, k_user, k_item = jax.random.split(key, 3)

    num_users, num_items, batch = 10, 12, 16
    params = init_params(k_param, num_users, num_items)

    user = jax.random.randint(k_user, (batch,), 0, num_users, dtype=jnp.int32)
    item = jax.random.randint(k_item, (batch,), 0, num_items, dtype=jnp.int32)

    out = sopred_forward(user, item, params)
    jax.block_until_ready(out)

    # Pure-JAX reference with the same dtype path (bf16 inputs/weights, f32 accumulate).
    def ref(user, item, p):
        f32, bf16 = jnp.float32, jnp.bfloat16
        mf_x = p["mf_usr_emb"][user].astype(f32) * p["mf_item_emb"][item].astype(f32)
        nn_u = p["nn_usr_emb"][user]
        nn_i = p["nn_item_emb"][item]
        h = (jnp.dot(nn_u, p["w1a"], preferred_element_type=f32)
             + jnp.dot(nn_i, p["w1b"], preferred_element_type=f32) + p["b1"])
        h = jnp.maximum(h, 0.0)
        h = jnp.dot(h.astype(bf16), p["w2"], preferred_element_type=f32) + p["b2"]
        h = jnp.maximum(h, 0.0)
        h = jnp.dot(h.astype(bf16), p["w3"], preferred_element_type=f32) + p["b3"]
        h = jnp.maximum(h, 0.0)
        return jnp.sum(mf_x * p["wn_mf"] + h * p["wn_h"], axis=-1) + p["bn"][0]

    expected = ref(user, item, params)
    assert out.shape == (batch,)
    assert jnp.allclose(out, expected, atol=1e-3, rtol=1e-3), (out, expected)
    print("KERNEL_OK")
</pallas_src>

<mosaic_0001>
module attributes {stable_mosaic.version = 11 : i64} {
  func.func @neumf_kernel(%arg0: i32, %arg1: memref<8x32xbf16, #tpu.memory_space<vmem>>, %arg2: memref<8x32xbf16, #tpu.memory_space<vmem>>, %arg3: memref<8x64xbf16, #tpu.memory_space<vmem>>, %arg4: memref<8x64xbf16, #tpu.memory_space<vmem>>, %arg5: memref<64x128xbf16, #tpu.memory_space<vmem>>, %arg6: memref<64x128xbf16, #tpu.memory_space<vmem>>, %arg7: memref<1x128xf32, #tpu.memory_space<vmem>>, %arg8: memref<128x64xbf16, #tpu.memory_space<vmem>>, %arg9: memref<1x64xf32, #tpu.memory_space<vmem>>, %arg10: memref<64x32xbf16, #tpu.memory_space<vmem>>, %arg11: memref<1x32xf32, #tpu.memory_space<vmem>>, %arg12: memref<1x32xf32, #tpu.memory_space<vmem>>, %arg13: memref<1x32xf32, #tpu.memory_space<vmem>>, %arg14: memref<1xf32, #tpu.memory_space<smem>>, %arg15: memref<1x8x1xf32, #tpu.memory_space<vmem>>) attributes {dimension_semantics = [#tpu.dimension_semantics<parallel>], iteration_bounds = array<i64: 2>, scalar_prefetch = 0 : i64, scratch_operands = 0 : i64, tpu.core_type = #tpu.core_type<tc>, window_params = [{transform_indices = @transform_0, window_bounds = array<i64: 8, 32>}, {transform_indices = @transform_1, window_bounds = array<i64: 8, 32>}, {transform_indices = @transform_2, window_bounds = array<i64: 8, 64>}, {transform_indices = @transform_3, window_bounds = array<i64: 8, 64>}, {pipeline_mode = #tpu.pipeline_mode<synchronous>, transform_indices = @transform_4, window_bounds = array<i64: 64, 128>}, {pipeline_mode = #tpu.pipeline_mode<synchronous>, transform_indices = @transform_5, window_bounds = array<i64: 64, 128>}, {pipeline_mode = #tpu.pipeline_mode<synchronous>, transform_indices = @transform_6, window_bounds = array<i64: 1, 128>}, {pipeline_mode = #tpu.pipeline_mode<synchronous>, transform_indices = @transform_7, window_bounds = array<i64: 128, 64>}, {pipeline_mode = #tpu.pipeline_mode<synchronous>, transform_indices = @transform_8, window_bounds = array<i64: 1, 64>}, {pipeline_mode = #tpu.pipeline_mode<synchronous>, transform_indices = @transform_9, window_bounds = array<i64: 64, 32>}, {pipeline_mode = #tpu.pipeline_mode<synchronous>, transform_indices = @transform_10, window_bounds = array<i64: 1, 32>}, {pipeline_mode = #tpu.pipeline_mode<synchronous>, transform_indices = @transform_11, window_bounds = array<i64: 1, 32>}, {pipeline_mode = #tpu.pipeline_mode<synchronous>, transform_indices = @transform_12, window_bounds = array<i64: 1, 32>}, {transform_indices = @transform_13, window_bounds = array<i64: 1>}, {transform_indices = @transform_14, window_bounds = array<i64: 1, 8, 1>}]} {
    %c0 = arith.constant 0 : index
    %c0_0 = arith.constant 0 : index
    %0 = vector.load %arg1[%c0, %c0_0] : memref<8x32xbf16, #tpu.memory_space<vmem>>, vector<8x32xbf16>
    %1 = arith.extf %0 : vector<8x32xbf16> to vector<8x32xf32>
    %c0_1 = arith.constant 0 : index
    %c0_2 = arith.constant 0 : index
    %2 = vector.load %arg2[%c0_1, %c0_2] : memref<8x32xbf16, #tpu.memory_space<vmem>>, vector<8x32xbf16>
    %3 = arith.extf %2 : vector<8x32xbf16> to vector<8x32xf32>
    %4 = arith.mulf %1, %3 : vector<8x32xf32>
    %c0_3 = arith.constant 0 : index
    %c0_4 = arith.constant 0 : index
    %5 = vector.load %arg3[%c0_3, %c0_4] : memref<8x64xbf16, #tpu.memory_space<vmem>>, vector<8x64xbf16>
    %c0_5 = arith.constant 0 : index
    %c0_6 = arith.constant 0 : index
    %6 = vector.load %arg5[%c0_5, %c0_6] : memref<64x128xbf16, #tpu.memory_space<vmem>>, vector<64x128xbf16>
    %cst = arith.constant dense<0.000000e+00> : vector<8x128xf32>
    %7 = tpu.matmul %5, %6, %cst {dimension_numbers = #tpu.dot_dimension_numbers<[1], [0], [0], [1], [0, 0, 1, 1], [], []>} : vector<8x64xbf16>, vector<64x128xbf16>, vector<8x128xf32> -> vector<8x128xf32>
    %c0_7 = arith.constant 0 : index
    %c0_8 = arith.constant 0 : index
    %8 = vector.load %arg4[%c0_7, %c0_8] : memref<8x64xbf16, #tpu.memory_space<vmem>>, vector<8x64xbf16>
    %c0_9 = arith.constant 0 : index
    %c0_10 = arith.constant 0 : index
    %9 = vector.load %arg6[%c0_9, %c0_10] : memref<64x128xbf16, #tpu.memory_space<vmem>>, vector<64x128xbf16>
    %cst_11 = arith.constant dense<0.000000e+00> : vector<8x128xf32>
    %10 = tpu.matmul %8, %9, %cst_11 {dimension_numbers = #tpu.dot_dimension_numbers<[1], [0], [0], [1], [0, 0, 1, 1], [], []>} : vector<8x64xbf16>, vector<64x128xbf16>, vector<8x128xf32> -> vector<8x128xf32>
    %11 = arith.addf %7, %10 : vector<8x128xf32>
    %c0_12 = arith.constant 0 : index
    %c0_13 = arith.constant 0 : index
    %12 = vector.load %arg7[%c0_12, %c0_13] : memref<1x128xf32, #tpu.memory_space<vmem>>, vector<1x128xf32>
    %13 = vector.broadcast %12 : vector<1x128xf32> to vector<8x128xf32>
    %14 = arith.addf %11, %13 : vector<8x128xf32>
    %cst_14 = arith.constant 0.000000e+00 : f32
    %15 = vector.broadcast %cst_14 : f32 to vector<8x128xf32>
    %16 = arith.maximumf %14, %15 : vector<8x128xf32>
    %17 = arith.truncf %16 : vector<8x128xf32> to vector<8x128xbf16>
    %c0_15 = arith.constant 0 : index
    %c0_16 = arith.constant 0 : index
    %18 = vector.load %arg8[%c0_15, %c0_16] : memref<128x64xbf16, #tpu.memory_space<vmem>>, vector<128x64xbf16>
    %cst_17 = arith.constant dense<0.000000e+00> : vector<8x64xf32>
    %19 = tpu.matmul %17, %18, %cst_17 {dimension_numbers = #tpu.dot_dimension_numbers<[1], [0], [0], [1], [0, 0, 1, 1], [], []>} : vector<8x128xbf16>, vector<128x64xbf16>, vector<8x64xf32> -> vector<8x64xf32>
    %c0_18 = arith.constant 0 : index
    %c0_19 = arith.constant 0 : index
    %20 = vector.load %arg9[%c0_18, %c0_19] : memref<1x64xf32, #tpu.memory_space<vmem>>, vector<1x64xf32>
    %21 = vector.broadcast %20 : vector<1x64xf32> to vector<8x64xf32>
    %22 = arith.addf %19, %21 : vector<8x64xf32>
    %cst_20 = arith.constant 0.000000e+00 : f32
    %23 = vector.broadcast %cst_20 : f32 to vector<8x64xf32>
    %24 = arith.maximumf %22, %23 : vector<8x64xf32>
    %25 = arith.truncf %24 : vector<8x64xf32> to vector<8x64xbf16>
    %c0_21 = arith.constant 0 : index
    %c0_22 = arith.constant 0 : index
    %26 = vector.load %arg10[%c0_21, %c0_22] : memref<64x32xbf16, #tpu.memory_space<vmem>>, vector<64x32xbf16>
    %cst_23 = arith.constant dense<0.000000e+00> : vector<8x32xf32>
    %27 = tpu.matmul %25, %26, %cst_23 {dimension_numbers = #tpu.dot_dimension_numbers<[1], [0], [0], [1], [0, 0, 1, 1], [], []>} : vector<8x64xbf16>, vector<64x32xbf16>, vector<8x32xf32> -> vector<8x32xf32>
    %c0_24 = arith.constant 0 : index
    %c0_25 = arith.constant 0 : index
    %28 = vector.load %arg11[%c0_24, %c0_25] : memref<1x32xf32, #tpu.memory_space<vmem>>, vector<1x32xf32>
    %29 = vector.broadcast %28 : vector<1x32xf32> to vector<8x32xf32>
    %30 = arith.addf %27, %29 : vector<8x32xf32>
    %cst_26 = arith.constant 0.000000e+00 : f32
    %31 = vector.broadcast %cst_26 : f32 to vector<8x32xf32>
    %32 = arith.maximumf %30, %31 : vector<8x32xf32>
    %c0_27 = arith.constant 0 : index
    %c0_28 = arith.constant 0 : index
    %33 = vector.load %arg12[%c0_27, %c0_28] : memref<1x32xf32, #tpu.memory_space<vmem>>, vector<1x32xf32>
    %34 = vector.broadcast %33 : vector<1x32xf32> to vector<8x32xf32>
    %35 = arith.mulf %4, %34 : vector<8x32xf32>
    %c0_29 = arith.constant 0 : index
    %c0_30 = arith.constant 0 : index
    %36 = vector.load %arg13[%c0_29, %c0_30] : memref<1x32xf32, #tpu.memory_space<vmem>>, vector<1x32xf32>
    %37 = vector.broadcast %36 : vector<1x32xf32> to vector<8x32xf32>
    %38 = arith.mulf %32, %37 : vector<8x32xf32>
    %39 = arith.addf %35, %38 : vector<8x32xf32>
    %cst_31 = arith.constant dense<0.000000e+00> : vector<8xf32>
    %40 = vector.multi_reduction <add>, %39, %cst_31 [1] : vector<8x32xf32> to vector<8xf32>
    %c0_32 = arith.constant 0 : index
    %41 = memref.load %arg14[%c0_32] : memref<1xf32, #tpu.memory_space<smem>>
    %42 = vector.broadcast %41 : f32 to vector<8xf32>
    %43 = arith.addf %40, %42 : vector<8xf32>
    %44 = vector.shape_cast %43 : vector<8xf32> to vector<1x8x1xf32>
    %c0_33 = arith.constant 0 : index
    %c0_34 = arith.constant 0 : index
    %c0_35 = arith.constant 0 : index
    %45 = vector.load %arg15[%c0_33, %c0_34, %c0_35] : memref<1x8x1xf32, #tpu.memory_space<vmem>>, vector<1x8x1xf32>
    tpu.vector_store %arg15[%c0_33, %c0_34, %c0_35], %44 {strides = array<i32>} : memref<1x8x1xf32, #tpu.memory_space<vmem>>, vector<1x8x1xf32>,
    return
  }
  func.func @transform_0(%arg0: i32) -> (i32, i32) {
    %c0_i32 = arith.constant 0 : i32
    %c0_i32_0 = arith.constant 0 : i32
    return %arg0, %c0_i32 : i32, i32
  }
  func.func @transform_1(%arg0: i32) -> (i32, i32) {
    %c0_i32 = arith.constant 0 : i32
    %c0_i32_0 = arith.constant 0 : i32
    return %arg0, %c0_i32 : i32, i32
  }
  func.func @transform_2(%arg0: i32) -> (i32, i32) {
    %c0_i32 = arith.constant 0 : i32
    %c0_i32_0 = arith.constant 0 : i32
    return %arg0, %c0_i32 : i32, i32
  }
  func.func @transform_3(%arg0: i32) -> (i32, i32) {
    %c0_i32 = arith.constant 0 : i32
    %c0_i32_0 = arith.constant 0 : i32
    return %arg0, %c0_i32 : i32, i32
  }
  func.func @transform_4(%arg0: i32) -> (i32, i32) {
    %c0_i32 = arith.constant 0 : i32
    %c0_i32_0 = arith.constant 0 : i32
    %c0_i32_1 = arith.constant 0 : i32
    return %c0_i32, %c0_i32_0 : i32, i32
  }
  func.func @transform_5(%arg0: i32) -> (i32, i32) {
    %c0_i32 = arith.constant 0 : i32
    %c0_i32_0 = arith.constant 0 : i32
    %c0_i32_1 = arith.constant 0 : i32
    return %c0_i32, %c0_i32_0 : i32, i32
  }
  func.func @transform_6(%arg0: i32) -> (i32, i32) {
    %c0_i32 = arith.constant 0 : i32
    %c0_i32_0 = arith.constant 0 : i32
    %c0_i32_1 = arith.constant 0 : i32
    return %c0_i32, %c0_i32_0 : i32, i32
  }
  func.func @transform_7(%arg0: i32) -> (i32, i32) {
    %c0_i32 = arith.constant 0 : i32
    %c0_i32_0 = arith.constant 0 : i32
    %c0_i32_1 = arith.constant 0 : i32
    return %c0_i32, %c0_i32_0 : i32, i32
  }
  func.func @transform_8(%arg0: i32) -> (i32, i32) {
    %c0_i32 = arith.constant 0 : i32
    %c0_i32_0 = arith.constant 0 : i32
    %c0_i32_1 = arith.constant 0 : i32
    return %c0_i32, %c0_i32_0 : i32, i32
  }
  func.func @transform_9(%arg0: i32) -> (i32, i32) {
    %c0_i32 = arith.constant 0 : i32
    %c0_i32_0 = arith.constant 0 : i32
    %c0_i32_1 = arith.constant 0 : i32
    return %c0_i32, %c0_i32_0 : i32, i32
  }
  func.func @transform_10(%arg0: i32) -> (i32, i32) {
    %c0_i32 = arith.constant 0 : i32
    %c0_i32_0 = arith.constant 0 : i32
    %c0_i32_1 = arith.constant 0 : i32
    return %c0_i32, %c0_i32_0 : i32, i32
  }
  func.func @transform_11(%arg0: i32) -> (i32, i32) {
    %c0_i32 = arith.constant 0 : i32
    %c0_i32_0 = arith.constant 0 : i32
    %c0_i32_1 = arith.constant 0 : i32
    return %c0_i32, %c0_i32_0 : i32, i32
  }
  func.func @transform_12(%arg0: i32) -> (i32, i32) {
    %c0_i32 = arith.constant 0 : i32
    %c0_i32_0 = arith.constant 0 : i32
    %c0_i32_1 = arith.constant 0 : i32
    return %c0_i32, %c0_i32_0 : i32, i32
  }
  func.func @transform_13(%arg0: i32) -> i32 {
    %c0_i32 = arith.constant 0 : i32
    %c0_i32_0 = arith.constant 0 : i32
    return %c0_i32 : i32
  }
  func.func @transform_14(%arg0: i32) -> (i32, i32, i32) {
    %c0_i32 = arith.constant 0 : i32
    %c0_i32_0 = arith.constant 0 : i32
    %c0_i32_1 = arith.constant 0 : i32
    return %arg0, %c0_i32, %c0_i32_0 : i32, i32, i32
  }
}

</mosaic_0001>

<llo_original>
// kernel: tpu_custom_call.1
$region0: #{tpu_custom_call.1}
  #allocation0 [shape = 'u32[]', space=smem, size = 0x4, offset = 0x4, fixed_abs, tag = 'smem constant byte address 0x4 - core index']
  #allocation1 [shape = 'u32[144,128]{1,0:T(1,128)}', space=vmem, size = 0x12000, scoped, tag = 'internal scratch']
  #allocation2 [shape = 'f32[1]{0:T(128)S(6)}', space=smem, size = 0x200, scoped, tag = 'scoped memory for tpu_custom_call.1']
  %s0 = inlined_call_operand.vmem [shape: bf16[16,32], index: 0, kind: input, shape index: {}]
  %s1 = inlined_call_operand.vmem [shape: bf16[16,32], index: 1, kind: input, shape index: {}]
  %s2 = inlined_call_operand.vmem [shape: bf16[16,64], index: 2, kind: input, shape index: {}]
  %s3 = inlined_call_operand.vmem [shape: bf16[16,64], index: 3, kind: input, shape index: {}]
  %s4 = inlined_call_operand.vmem [shape: bf16[64,128], index: 4, kind: input, shape index: {}]
  %s5 = inlined_call_operand.vmem [shape: bf16[64,128], index: 5, kind: input, shape index: {}]
  %s6 = inlined_call_operand.vmem [shape: f32[1,128], index: 6, kind: input, shape index: {}]
  %s7 = inlined_call_operand.vmem [shape: bf16[128,64], index: 7, kind: input, shape index: {}]
  %s8 = inlined_call_operand.vmem [shape: f32[1,64], index: 8, kind: input, shape index: {}]
  %s9 = inlined_call_operand.vmem [shape: bf16[64,32], index: 9, kind: input, shape index: {}]
  %s10 = inlined_call_operand.vmem [shape: f32[1,32], index: 10, kind: input, shape index: {}]
  %s11 = inlined_call_operand.vmem [shape: f32[1,32], index: 11, kind: input, shape index: {}]
  %s12 = inlined_call_operand.vmem [shape: f32[1,32], index: 12, kind: input, shape index: {}]
  %s13 = inlined_call_operand.<no memory space> [shape: f32[1], index: 13, kind: input, shape index: {}]
  %s14 = inlined_call_operand.vmem [shape: f32[2,8,1], index: 14, kind: output, shape index: {}]
  %s15 = sld [smem:[#allocation0]]
  $region89: #{tpu_custom_call.1} parent=0
    _
  %s17 = ssub.s32 1, %s15
  %s18 = scalar_select 0, %s17, %s15
  %19 = sst [smem:[#allocation2]] %s13
  loop: start=0, step=1, limit=4
  $region2: #{tpu_custom_call.1} parent=0 // loop_pre_header
    _
  $region3: #{tpu_custom_call.1} parent=0 // loop_header
    %s21 = sphi 0, %s25
    %p22 = scmp.ge.s32.totalorder %s21, 4
    %s31 = sphi 0, %s33
    %s34 = sphi 0, %s31
    %s35 = sphi 0, %s34
    %s51 = sphi 0, %s35
    %s57 = sphi 0, %s59
    %s60 = sphi 0, %s57
    %s61 = sphi 0, %s60
    %s77 = sphi 0, %s61
    %s83 = sphi 0, %s85
    %s86 = sphi 0, %s83
    %s87 = sphi 0, %s86
    %s103 = sphi 0, %s87
    %s109 = sphi 0, %s111
    %s112 = sphi 0, %s109
    %s113 = sphi 0, %s112
    %s129 = sphi 0, %s113
    %s133 = sphi 0, %s133
    %s135 = sphi 0, %s133
    %s136 = sphi 0, %s135
    %s150 = sphi 0, %s136
    %s154 = sphi 0, %s154
    %s156 = sphi 0, %s154
    %s157 = sphi 0, %s156
    %s171 = sphi 0, %s157
    %s175 = sphi 0, %s175
    %s177 = sphi 0, %s175
    %s178 = sphi 0, %s177
    %s192 = sphi 0, %s178
    %s196 = sphi 0, %s196
    %s198 = sphi 0, %s196
    %s199 = sphi 0, %s198
    %s213 = sphi 0, %s199
    %s217 = sphi 0, %s217
    %s219 = sphi 0, %s217
    %s220 = sphi 0, %s219
    %s234 = sphi 0, %s220
    %s238 = sphi 0, %s238
    %s240 = sphi 0, %s238
    %s241 = sphi 0, %s240
    %s255 = sphi 0, %s241
    %s259 = sphi 0, %s259
    %s261 = sphi 0, %s259
    %s262 = sphi 0, %s261
    %s276 = sphi 0, %s262
    %s280 = sphi 0, %s280
    %s282 = sphi 0, %s280
    %s283 = sphi 0, %s282
    %s297 = sphi 0, %s283
    %s301 = sphi 0, %s301
    %s303 = sphi 0, %s301
    %s304 = sphi 0, %s303
    %s318 = sphi 0, %s304
    %s322 = sphi 0, %s322
    %s324 = sphi 0, %s322
    %s325 = sphi 0, %s324
    %s339 = sphi 0, %s325
    %s345 = sphi 0, %s347
    %s348 = sphi 0, %s345
    %s349 = sphi 0, %s348
    %s365 = sphi 0, %s349
  $region4: #{tpu_custom_call.1} parent=0 // loop_header_branch
    %24 = sbr.rel (%p22) target = $region8
  $region5: #{tpu_custom_call.1} parent=0 // loop_body
    %s26 = ssub.s32 %s21, 1
    %s27 = ssub.s32 %s21, 2
    %s28 = sadd.s32 %s21, 1
    %s29 = ssub.s32 %s21, %s28
    %p30 = scmp.eq.s32.totalorder %s29, 0
    %s32 = sadd.s32 %s31, 1
    %s33 = scalar_select %p30, %s31, %s32
    %p36 = pneg %p30
    %p37 = scmp.eq.s32.totalorder %s21, 1
    %p38 = por %p36, %p37
    %p39 = scmp.ne.s32.totalorder %s31, %s34
    %p40 = scmp.eq.s32.totalorder %s21, 0
    %p41 = por %p39, %p40
    %p42 = scmp.ne.s32.totalorder %s31, %s34
    %p43 = scmp.eq.s32.totalorder %s26, 1
    %p44 = por %p42, %p43
    %p45 = scmp.ne.s32.totalorder %s34, %s35
    %p46 = scmp.eq.s32.totalorder %s26, 0
    %p47 = por %p45, %p46
    %p48 = scmp.ne.s32.totalorder %s34, %s35
    %p49 = scmp.eq.s32.totalorder %s27, 1
    %p50 = por %p48, %p49
    %p52 = scmp.ne.s32.totalorder %s35, %s51
    %p53 = scmp.eq.s32.totalorder %s27, 0
    %p54 = por %p52, %p53
    %s55 = ssub.s32 %s21, %s28
    %p56 = scmp.eq.s32.totalorder %s55, 0
    %s58 = sadd.s32 %s57, 1
    %s59 = scalar_select %p56, %s57, %s58
    %p62 = pneg %p56
    %p63 = scmp.eq.s32.totalorder %s21, 1
    %p64 = por %p62, %p63
    %p65 = scmp.ne.s32.totalorder %s57, %s60
    %p66 = scmp.eq.s32.totalorder %s21, 0
    %p67 = por %p65, %p66
    %p68 = scmp.ne.s32.totalorder %s57, %s60
    %p69 = scmp.eq.s32.totalorder %s26, 1
    %p70 = por %p68, %p69
    %p71 = scmp.ne.s32.totalorder %s60, %s61
    %p72 = scmp.eq.s32.totalorder %s26, 0
    %p73 = por %p71, %p72
    %p74 = scmp.ne.s32.totalorder %s60, %s61
    %p75 = scmp.eq.s32.totalorder %s27, 1
    %p76 = por %p74, %p75
    %p78 = scmp.ne.s32.totalorder %s61, %s77
    %p79 = scmp.eq.s32.totalorder %s27, 0
    %p80 = por %p78, %p79
    %s81 = ssub.s32 %s21, %s28
    %p82 = scmp.eq.s32.totalorder %s81, 0
    %s84 = sadd.s32 %s83, 1
    %s85 = scalar_select %p82, %s83, %s84
    %p88 = pneg %p82
    %p89 = scmp.eq.s32.totalorder %s21, 1
    %p90 = por %p88, %p89
    %p91 = scmp.ne.s32.totalorder %s83, %s86
    %p92 = scmp.eq.s32.totalorder %s21, 0
    %p93 = por %p91, %p92
    %p94 = scmp.ne.s32.totalorder %s83, %s86
    %p95 = scmp.eq.s32.totalorder %s26, 1
    %p96 = por %p94, %p95
    %p97 = scmp.ne.s32.totalorder %s86, %s87
    %p98 = scmp.eq.s32.totalorder %s26, 0
    %p99 = por %p97, %p98
    %p100 = scmp.ne.s32.totalorder %s86, %s87
    %p101 = scmp.eq.s32.totalorder %s27, 1
    %p102 = por %p100, %p101
    %p104 = scmp.ne.s32.totalorder %s87, %s103
    %p105 = scmp.eq.s32.totalorder %s27, 0
    %p106 = por %p104, %p105
    %s107 = ssub.s32 %s21, %s28
    %p108 = scmp.eq.s32.totalorder %s107, 0
    %s110 = sadd.s32 %s109, 1
    %s111 = scalar_select %p108, %s109, %s110
    %p114 = pneg %p108
    %p115 = scmp.eq.s32.totalorder %s21, 1
    %p116 = por %p114, %p115
    %p117 = scmp.ne.s32.totalorder %s109, %s112
    %p118 = scmp.eq.s32.totalorder %s21, 0
    %p119 = por %p117, %p118
    %p120 = scmp.ne.s32.totalorder %s109, %s112
    %p121 = scmp.eq.s32.totalorder %s26, 1
    %p122 = por %p120, %p121
    %p123 = scmp.ne.s32.totalorder %s112, %s113
    %p124 = scmp.eq.s32.totalorder %s26, 0
    %p125 = por %p123, %p124
    %p126 = scmp.ne.s32.totalorder %s112, %s113
    %p127 = scmp.eq.s32.totalorder %s27, 1
    %p128 = por %p126, %p127
    %p130 = scmp.ne.s32.totalorder %s113, %s129
    %p131 = scmp.eq.s32.totalorder %s27, 0
    %p132 = por %p130, %p131
    %s134 = sadd.s32 %s133, 1
    %p137 = scmp.eq.s32.totalorder %s21, 1
    %p138 = scmp.ne.s32.totalorder %s133, %s135
    %p139 = scmp.eq.s32.totalorder %s21, 0
    %p140 = por %p138, %p139
    %p141 = scmp.ne.s32.totalorder %s133, %s135
    %p142 = scmp.eq.s32.totalorder %s26, 1
    %p143 = por %p141, %p142
    %p144 = scmp.ne.s32.totalorder %s135, %s136
    %p145 = scmp.eq.s32.totalorder %s26, 0
    %p146 = por %p144, %p145
    %p147 = scmp.ne.s32.totalorder %s135, %s136
    %p148 = scmp.eq.s32.totalorder %s27, 1
    %p149 = por %p147, %p148
    %p151 = scmp.ne.s32.totalorder %s136, %s150
    %p152 = scmp.eq.s32.totalorder %s27, 0
    %p153 = por %p151, %p152
    %s155 = sadd.s32 %s154, 1
    %p158 = scmp.eq.s32.totalorder %s21, 1
    %p159 = scmp.ne.s32.totalorder %s154, %s156
    %p160 = scmp.eq.s32.totalorder %s21, 0
    %p161 = por %p159, %p160
    %p162 = scmp.ne.s32.totalorder %s154, %s156
    %p163 = scmp.eq.s32.totalorder %s26, 1
    %p164 = por %p162, %p163
    %p165 = scmp.ne.s32.totalorder %s156, %s157
    %p166 = scmp.eq.s32.totalorder %s26, 0
    %p167 = por %p165, %p166
    %p168 = scmp.ne.s32.totalorder %s156, %s157
    %p169 = scmp.eq.s32.totalorder %s27, 1
    %p170 = por %p168, %p169
    %p172 = scmp.ne.s32.totalorder %s157, %s171
    %p173 = scmp.eq.s32.totalorder %s27, 0
    %p174 = por %p172, %p173
    %s176 = sadd.s32 %s175, 1
    %p179 = scmp.eq.s32.totalorder %s21, 1
    %p180 = scmp.ne.s32.totalorder %s175, %s177
    %p181 = scmp.eq.s32.totalorder %s21, 0
    %p182 = por %p180, %p181
    %p183 = scmp.ne.s32.totalorder %s175, %s177
    %p184 = scmp.eq.s32.totalorder %s26, 1
    %p185 = por %p183, %p184
    %p186 = scmp.ne.s32.totalorder %s177, %s178
    %p187 = scmp.eq.s32.totalorder %s26, 0
    %p188 = por %p186, %p187
    %p189 = scmp.ne.s32.totalorder %s177, %s178
    %p190 = scmp.eq.s32.totalorder %s27, 1
    %p191 = por %p189, %p190
    %p193 = scmp.ne.s32.totalorder %s178, %s192
    %p194 = scmp.eq.s32.totalorder %s27, 0
    %p195 = por %p193, %p194
    %s197 = sadd.s32 %s196, 1
    %p200 = scmp.eq.s32.totalorder %s21, 1
    %p201 = scmp.ne.s32.totalorder %s196, %s198
    %p202 = scmp.eq.s32.totalorder %s21, 0
    %p203 = por %p201, %p202
    %p204 = scmp.ne.s32.totalorder %s196, %s198
    %p205 = scmp.eq.s32.totalorder %s26, 1
    %p206 = por %p204, %p205
    %p207 = scmp.ne.s32.totalorder %s198, %s199
    %p208 = scmp.eq.s32.totalorder %s26, 0
    %p209 = por %p207, %p208
    %p210 = scmp.ne.s32.totalorder %s198, %s199
    %p211 = scmp.eq.s32.totalorder %s27, 1
    %p212 = por %p210, %p211
    %p214 = scmp.ne.s32.totalorder %s199, %s213
    %p215 = scmp.eq.s32.totalorder %s27, 0
    %p216 = por %p214, %p215
    %s218 = sadd.s32 %s217, 1
    %p221 = scmp.eq.s32.totalorder %s21, 1
    %p222 = scmp.ne.s32.totalorder %s217, %s219
    %p223 = scmp.eq.s32.totalorder %s21, 0
    %p224 = por %p222, %p223
    %p225 = scmp.ne.s32.totalorder %s217, %s219
    %p226 = scmp.eq.s32.totalorder %s26, 1
    %p227 = por %p225, %p226
    %p228 = scmp.ne.s32.totalorder %s219, %s220
    %p229 = scmp.eq.s32.totalorder %s26, 0
    %p230 = por %p228, %p229
    %p231 = scmp.ne.s32.totalorder %s219, %s220
    %p232 = scmp.eq.s32.totalorder %s27, 1
    %p233 = por %p231, %p232
    %p235 = scmp.ne.s32.totalorder %s220, %s234
    %p236 = scmp.eq.s32.totalorder %s27, 0
    %p237 = por %p235, %p236
    %s239 = sadd.s32 %s238, 1
    %p242 = scmp.eq.s32.totalorder %s21, 1
    %p243 = scmp.ne.s32.totalorder %s238, %s240
    %p244 = scmp.eq.s32.totalorder %s21, 0
    %p245 = por %p243, %p244
    %p246 = scmp.ne.s32.totalorder %s238, %s240
    %p247 = scmp.eq.s32.totalorder %s26, 1
    %p248 = por %p246, %p247
    %p249 = scmp.ne.s32.totalorder %s240, %s241
    %p250 = scmp.eq.s32.totalorder %s26, 0
    %p251 = por %p249, %p250
    %p252 = scmp.ne.s32.totalorder %s240, %s241
    %p253 = scmp.eq.s32.totalorder %s27, 1
    %p254 = por %p252, %p253
    %p256 = scmp.ne.s32.totalorder %s241, %s255
    %p257 = scmp.eq.s32.totalorder %s27, 0
    %p258 = por %p256, %p257
    %s260 = sadd.s32 %s259, 1
    %p263 = scmp.eq.s32.totalorder %s21, 1
    %p264 = scmp.ne.s32.totalorder %s259, %s261
    %p265 = scmp.eq.s32.totalorder %s21, 0
    %p266 = por %p264, %p265
    %p267 = scmp.ne.s32.totalorder %s259, %s261
    %p268 = scmp.eq.s32.totalorder %s26, 1
    %p269 = por %p267, %p268
    %p270 = scmp.ne.s32.totalorder %s261, %s262
    %p271 = scmp.eq.s32.totalorder %s26, 0
    %p272 = por %p270, %p271
    %p273 = scmp.ne.s32.totalorder %s261, %s262
    %p274 = scmp.eq.s32.totalorder %s27, 1
    %p275 = por %p273, %p274
    %p277 = scmp.ne.s32.totalorder %s262, %s276
    %p278 = scmp.eq.s32.totalorder %s27, 0
    %p279 = por %p277, %p278
    %s281 = sadd.s32 %s280, 1
    %p284 = scmp.eq.s32.totalorder %s21, 1
    %p285 = scmp.ne.s32.totalorder %s280, %s282
    %p286 = scmp.eq.s32.totalorder %s21, 0
    %p287 = por %p285, %p286
    %p288 = scmp.ne.s32.totalorder %s280, %s282
    %p289 = scmp.eq.s32.totalorder %s26, 1
    %p290 = por %p288, %p289
    %p291 = scmp.ne.s32.totalorder %s282, %s283
    %p292 = scmp.eq.s32.totalorder %s26, 0
    %p293 = por %p291, %p292
    %p294 = scmp.ne.s32.totalorder %s282, %s283
    %p295 = scmp.eq.s32.totalorder %s27, 1
    %p296 = por %p294, %p295
    %p298 = scmp.ne.s32.totalorder %s283, %s297
    %p299 = scmp.eq.s32.totalorder %s27, 0
    %p300 = por %p298, %p299
    %s302 = sadd.s32 %s301, 1
    %p305 = scmp.eq.s32.totalorder %s21, 1
    %p306 = scmp.ne.s32.totalorder %s301, %s303
    %p307 = scmp.eq.s32.totalorder %s21, 0
    %p308 = por %p306, %p307
    %p309 = scmp.ne.s32.totalorder %s301, %s303
    %p310 = scmp.eq.s32.totalorder %s26, 1
    %p311 = por %p309, %p310
    %p312 = scmp.ne.s32.totalorder %s303, %s304
    %p313 = scmp.eq.s32.totalorder %s26, 0
    %p314 = por %p312, %p313
    %p315 = scmp.ne.s32.totalorder %s303, %s304
    %p316 = scmp.eq.s32.totalorder %s27, 1
    %p317 = por %p315, %p316
    %p319 = scmp.ne.s32.totalorder %s304, %s318
    %p320 = scmp.eq.s32.totalorder %s27, 0
    %p321 = por %p319, %p320
    %s323 = sadd.s32 %s322, 1
    %p326 = scmp.eq.s32.totalorder %s21, 1
    %p327 = scmp.ne.s32.totalorder %s322, %s324
    %p328 = scmp.eq.s32.totalorder %s21, 0
    %p329 = por %p327, %p328
    %p330 = scmp.ne.s32.totalorder %s322, %s324
    %p331 = scmp.eq.s32.totalorder %s26, 1
    %p332 = por %p330, %p331
    %p333 = scmp.ne.s32.totalorder %s324, %s325
    %p334 = scmp.eq.s32.totalorder %s26, 0
    %p335 = por %p333, %p334
    %p336 = scmp.ne.s32.totalorder %s324, %s325
    %p337 = scmp.eq.s32.totalorder %s27, 1
    %p338 = por %p336, %p337
    %p340 = scmp.ne.s32.totalorder %s325, %s339
    %p341 = scmp.eq.s32.totalorder %s27, 0
    %p342 = por %p340, %p341
    %s343 = ssub.s32 %s21, %s28
    %p344 = scmp.eq.s32.totalorder %s343, 0
    %s346 = sadd.s32 %s345, 1
    %s347 = scalar_select %p344, %s345, %s346
    %p350 = pneg %p344
    %p351 = scmp.eq.s32.totalorder %s21, 1
    %p352 = por %p350, %p351
    %p353 = scmp.ne.s32.totalorder %s345, %s348
    %p354 = scmp.eq.s32.totalorder %s21, 0
    %p355 = por %p353, %p354
    %p356 = scmp.ne.s32.totalorder %s345, %s348
    %p357 = scmp.eq.s32.totalorder %s26, 1
    %p358 = por %p356, %p357
    %p359 = scmp.ne.s32.totalorder %s348, %s349
    %p360 = scmp.eq.s32.totalorder %s26, 0
    %p361 = por %p359, %p360
    %p362 = scmp.ne.s32.totalorder %s348, %s349
    %p363 = scmp.eq.s32.totalorder %s27, 1
    %p364 = por %p362, %p363
    %p366 = scmp.ne.s32.totalorder %s349, %s365
    %p367 = scmp.eq.s32.totalorder %s27, 0
    %p368 = por %p366, %p367
    %p369 = scmp.le.s32.totalorder 1, %s21
    %p370 = scmp.lt.s32.totalorder %s21, 3
    %p371 = pnand %p369, %p370
    %p372 = pneg %p371
    // Predicated region
    $region9: #{tpu_custom_call.1} parent=5 // pred_check
      _
    $region10: #{tpu_custom_call.1} parent=5 // pred_check_branch
      %374 = sbr.rel (%p371) target = $region12
    $region11: #{tpu_custom_call.1} parent=5 // pred_region
      %s375 = ssub.s32 %s21, 1
      // Predicated region
      $region13: #{tpu_custom_call.1} parent=11 // pred_check
        %p376 = pneg %p146
      $region14: #{tpu_custom_call.1} parent=11 // pred_check_branch
        %378 = sbr.rel (%p376) target = $region16
      $region15: #{tpu_custom_call.1} parent=11 // pred_region
        _
      $region16: #{tpu_custom_call.1} parent=11 // pred_fallthru
        _
      // Predicated region
      $region17: #{tpu_custom_call.1} parent=11 // pred_check
        %p379 = pneg %p167
      $region18: #{tpu_custom_call.1} parent=11 // pred_check_branch
        %381 = sbr.rel (%p379) target = $region20
      $region19: #{tpu_custom_call.1} parent=11 // pred_region
        _
      $region20: #{tpu_custom_call.1} parent=11 // pred_fallthru
        _
      // Predicated region
      $region21: #{tpu_custom_call.1} parent=11 // pred_check
        %p382 = pneg %p188
      $region22: #{tpu_custom_call.1} parent=11 // pred_check_branch
        %384 = sbr.rel (%p382) target = $region24
      $region23: #{tpu_custom_call.1} parent=11 // pred_region
        _
      $region24: #{tpu_custom_call.1} parent=11 // pred_fallthru
        _
      // Predicated region
      $region25: #{tpu_custom_call.1} parent=11 // pred_check
        %p385 = pneg %p209
      $region26: #{tpu_custom_call.1} parent=11 // pred_check_branch
        %387 = sbr.rel (%p385) target = $region28
      $region27: #{tpu_custom_call.1} parent=11 // pred_region
        _
      $region28: #{tpu_custom_call.1} parent=11 // pred_fallthru
        _
      // Predicated region
      $region29: #{tpu_custom_call.1} parent=11 // pred_check
        %p388 = pneg %p230
      $region30: #{tpu_custom_call.1} parent=11 // pred_check_branch
        %390 = sbr.rel (%p388) target = $region32
      $region31: #{tpu_custom_call.1} parent=11 // pred_region
        _
      $region32: #{tpu_custom_call.1} parent=11 // pred_fallthru
        _
      // Predicated region
      $region33: #{tpu_custom_call.1} parent=11 // pred_check
        %p391 = pneg %p251
      $region34: #{tpu_custom_call.1} parent=11 // pred_check_branch
        %393 = sbr.rel (%p391) target = $region36
      $region35: #{tpu_custom_call.1} parent=11 // pred_region
        _
      $region36: #{tpu_custom_call.1} parent=11 // pred_fallthru
        _
      // Predicated region
      $region37: #{tpu_custom_call.1} parent=11 // pred_check
        %p394 = pneg %p272
      $region38: #{tpu_custom_call.1} parent=11 // pred_check_branch
        %396 = sbr.rel (%p394) target = $region40
      $region39: #{tpu_custom_call.1} parent=11 // pred_region
        _
      $region40: #{tpu_custom_call.1} parent=11 // pred_fallthru
        _
      // Predicated region
      $region41: #{tpu_custom_call.1} parent=11 // pred_check
        %p397 = pneg %p293
      $region42: #{tpu_custom_call.1} parent=11 // pred_check_branch
        %399 = sbr.rel (%p397) target = $region44
      $region43: #{tpu_custom_call.1} parent=11 // pred_region
        _
      $region44: #{tpu_custom_call.1} parent=11 // pred_fallthru
        _
      // Predicated region
      $region45: #{tpu_custom_call.1} parent=11 // pred_check
        %p400 = pneg %p314
      $region46: #{tpu_custom_call.1} parent=11 // pred_check_branch
        %402 = sbr.rel (%p400) target = $region48
      $region47: #{tpu_custom_call.1} parent=11 // pred_region
        _
      $region48: #{tpu_custom_call.1} parent=11 // pred_fallthru
        _
      // Predicated region
      $region49: #{tpu_custom_call.1} parent=11 // pred_check
        %p403 = pneg %p335
      $region50: #{tpu_custom_call.1} parent=11 // pred_check_branch
        %405 = sbr.rel (%p403) target = $region52
      $region51: #{tpu_custom_call.1} parent=11 // pred_region
        _
      $region52: #{tpu_custom_call.1} parent=11 // pred_fallthru
        _
    $region12: #{tpu_custom_call.1} parent=5 // pred_fallthru
      _
    %p406 = scmp.lt.s32.totalorder %s21, 2
    // Predicated region
    $region53: #{tpu_custom_call.1} parent=5 // pred_check
      %p407 = pneg %p406
    $region54: #{tpu_custom_call.1} parent=5 // pred_check_branch
      %409 = sbr.rel (%p407) target = $region56
    $region55: #{tpu_custom_call.1} parent=5 // pred_region
      // Predicated region
      $region57: #{tpu_custom_call.1} parent=55 // pred_check
        %p410 = pneg %p41
      $region58: #{tpu_custom_call.1} parent=55 // pred_check_branch
        %412 = sbr.rel (%p410) target = $region60
      $region59: #{tpu_custom_call.1} parent=55 // pred_region
        %p413 = scmp.lt.s32.totalorder %s21, 1
        %s414 = scalar_select %p413, %s21, 1
        %s415 = smul.addr %s414, 4
        %s416 = scalar_lea.vmem %s0, %s415
      $region60: #{tpu_custom_call.1} parent=55 // pred_fallthru
        _
      // Predicated region
      $region61: #{tpu_custom_call.1} parent=55 // pred_check
        %p417 = pneg %p67
      $region62: #{tpu_custom_call.1} parent=55 // pred_check_branch
        %419 = sbr.rel (%p417) target = $region64
      $region63: #{tpu_custom_call.1} parent=55 // pred_region
        %p420 = scmp.lt.s32.totalorder %s21, 1
        %s421 = scalar_select %p420, %s21, 1
        %s422 = smul.addr %s421, 4
        %s423 = scalar_lea.vmem %s1, %s422
      $region64: #{tpu_custom_call.1} parent=55 // pred_fallthru
        _
      // Predicated region
      $region65: #{tpu_custom_call.1} parent=55 // pred_check
        %p424 = pneg %p93
      $region66: #{tpu_custom_call.1} parent=55 // pred_check_branch
        %426 = sbr.rel (%p424) target = $region68
      $region67: #{tpu_custom_call.1} parent=55 // pred_region
        %p427 = scmp.lt.s32.totalorder %s21, 1
        %s428 = scalar_select %p427, %s21, 1
        %s429 = smul.addr %s428, 4
        %s430 = scalar_lea.vmem %s2, %s429
      $region68: #{tpu_custom_call.1} parent=55 // pred_fallthru
        _
      // Predicated region
      $region69: #{tpu_custom_call.1} parent=55 // pred_check
        %p431 = pneg %p119
      $region70: #{tpu_custom_call.1} parent=55 // pred_check_branch
        %433 = sbr.rel (%p431) target = $region72
      $region71: #{tpu_custom_call.1} parent=55 // pred_region
        %p434 = scmp.lt.s32.totalorder %s21, 1
        %s435 = scalar_select %p434, %s21, 1
        %s436 = smul.addr %s435, 4
        %s437 = scalar_lea.vmem %s3, %s436
      $region72: #{tpu_custom_call.1} parent=55 // pred_fallthru
        _
    $region56: #{tpu_custom_call.1} parent=5 // pred_fallthru
      _
    %p438 = scmp.le.s32.totalorder 1, %s21
    %p439 = scmp.lt.s32.totalorder %s21, 3
    %p440 = pnand %p438, %p439
    %p441 = pneg %p440
    // Predicated region
    $region73: #{tpu_custom_call.1} parent=5 // pred_check
      _
    $region74: #{tpu_custom_call.1} parent=5 // pred_check_branch
      %443 = sbr.rel (%p440) target = $region76
    $region75: #{tpu_custom_call.1} parent=5 // pred_region
      %s444 = ssub.s32 %s21, 1
      %p445 = scmp.lt.s32.totalorder %s26, 1
      %s446 = scalar_select %p445, %s26, 1
      %s447 = smul.addr %s446, 4
      %s448 = scalar_lea.vmem %s0, %s447
      %p449 = pneg %p47
      %p450 = pneg %p44
      %p451 = scmp.lt.s32.totalorder %s26, 1
      %s452 = scalar_select %p451, %s26, 1
      %s453 = smul.addr %s452, 4
      %s454 = scalar_lea.vmem %s1, %s453
      %p455 = pneg %p73
      %p456 = pneg %p70
      %p457 = scmp.lt.s32.totalorder %s26, 1
      %s458 = scalar_select %p457, %s26, 1
      %s459 = smul.addr %s458, 4
      %s460 = scalar_lea.vmem %s2, %s459
      %p461 = pneg %p99
      %p462 = pneg %p96
      %p463 = scmp.lt.s32.totalorder %s26, 1
      %s464 = scalar_select %p463, %s26, 1
      %s465 = smul.addr %s464, 4
      %s466 = scalar_lea.vmem %s3, %s465
      %p467 = pneg %p125
      %p468 = pneg %p122
      %p469 = pneg %p146
      %p470 = pneg %p143
      %p471 = pneg %p167
      %p472 = pneg %p164
      %p473 = pneg %p188
      %p474 = pneg %p185
      %p475 = pneg %p209
      %p476 = pneg %p206
      %p477 = pneg %p230
      %p478 = pneg %p227
      %p479 = pneg %p251
      %p480 = pneg %p248
      %p481 = pneg %p272
      %p482 = pneg %p269
      %p483 = pneg %p293
      %p484 = pneg %p290
      %p485 = pneg %p314
      %p486 = pneg %p311
      %p487 = pneg %p335
      %p488 = pneg %p332
      %p489 = pneg %p361
      %p490 = pneg %p358
      %p491 = scmp.lt.s32.totalorder %s26, 1
      %s492 = scalar_select %p491, %s26, 1
      %s493 = smul.addr %s492, 8
      %s494 = scalar_lea.vmem %s14, %s493
      %p495 = scmp.lt.s32.totalorder %s26, 1
      %s496 = scalar_select %p495, %s26, 1
      %s497 = smul.addr %s496, 4
      %s498 = scalar_lea.vmem %s0, %s497
      %p499 = scmp.lt.s32.totalorder %s26, 1
      %s500 = scalar_select %p499, %s26, 1
      %s501 = smul.addr %s500, 4
      %s502 = scalar_lea.vmem %s1, %s501
      %p503 = scmp.lt.s32.totalorder %s26, 1
      %s504 = scalar_select %p503, %s26, 1
      %s505 = smul.addr %s504, 4
      %s506 = scalar_lea.vmem %s2, %s505
      %p507 = scmp.lt.s32.totalorder %s26, 1
      %s508 = scalar_select %p507, %s26, 1
      %s509 = smul.addr %s508, 4
      %s510 = scalar_lea.vmem %s3, %s509
      %p511 = scmp.lt.s32.totalorder %s26, 1
      %s512 = scalar_select %p511, %s26, 1
      %s513 = smul.addr %s512, 8
      %s514 = scalar_lea.vmem %s14, %s513
      %v516 = vld [vmem:[%s498] sm:$0xf]
      %v517 = vunpack.c.l.bf16 %v516
      %v518 = vld [vmem:[%s502] sm:$0xf]
      %v519 = vunpack.c.l.bf16 %v518
      %v520 = vmul.f32 %v517, %v519
      %v521 = vld [vmem:[%s506] sm:$0xf]
      %v522 = vld [vmem:[%s4] sm:$0xf]
      %v523 = vld [vmem:[%s4 + $0x4] sm:$0xf]
      %v524 = vld [vmem:[%s4 + $0x8] sm:$0xf]
      %v525 = vld [vmem:[%s4 + $0xc] sm:$0xf]
      %v526 = vld [vmem:[%s4 + $0x10] sm:$0xf]
      %v527 = vld [vmem:[%s4 + $0x14] sm:$0xf]
      %v528 = vld [vmem:[%s4 + $0x18] sm:$0xf]
      %v529 = vld [vmem:[%s4 + $0x1c] sm:$0xf]
      %v530 = vld [vmem:[%s510] sm:$0xf]
      %v531 = vld [vmem:[%s5] sm:$0xf]
      %v532 = vld [vmem:[%s5 + $0x4] sm:$0xf]
      %v533 = vld [vmem:[%s5 + $0x8] sm:$0xf]
      %v534 = vld [vmem:[%s5 + $0xc] sm:$0xf]
      %v535 = vld [vmem:[%s5 + $0x10] sm:$0xf]
      %v536 = vld [vmem:[%s5 + $0x14] sm:$0xf]
      %v537 = vld [vmem:[%s5 + $0x18] sm:$0xf]
      %v538 = vld [vmem:[%s5 + $0x1c] sm:$0xf]
      %v547 = vunpack.c.l.b16 %v531
      %v548 = vunpack.c.l.b16 %v532
      %v549 = vunpack.c.l.b16 %v533
      %v550 = vunpack.c.l.b16 %v534
      %v551 = vunpack.c.l.b16 %v535
      %v552 = vunpack.c.l.b16 %v536
      %v553 = vunpack.c.l.b16 %v537
      %v554 = vunpack.c.l.b16 %v538
      %v555 = vpack.c.b16 %v548, %v547
      %v556 = vpack.c.b16 %v550, %v549
      %v557 = vpack.c.b16 %v552, %v551
      %v558 = vpack.c.b16 %v554, %v553
      %vm563 = vcmask 523264
      %v565 = vsel %vm563, %v530, 0
      %567 = vmatprep.subr.bf16.mxu0 0
      %568 = vmatpush1.bf16.msra.mxu0 %v555
      %569 = vmatprep.subr.bf16.mxu0 0
      %570 = vmatpush1.bf16.msra.mxu0 %v556
      %571 = vmatprep.subr.bf16.mxu0 0
      %572 = vmatpush1.bf16.msra.mxu0 %v557
      %573 = vmatprep.subr.bf16.mxu0 0
      %574 = vmatpush1.bf16.msra.mxu0 %v558
      %575 = vmatprep.subr.bf16.mxu0 0
      %576 = vmatpush1.bf16.msra.mxu0 0
      %577 = vmatprep.subr.bf16.mxu0 0
      %578 = vmatpush1.bf16.msra.mxu0 0
      %579 = vmatprep.subr.bf16.mxu0 0
      %580 = vmatpush1.bf16.msra.mxu0 0
      %581 = vmatprep.subr.bf16.mxu0 0
      %582 = vmatpush1.bf16.msra.mxu0 0
      %583 = vmatprep.subr.bf16.mxu0 0
      %584 = vmatpush1.bf16.msra.mxu0 0
      %585 = vmatprep.subr.bf16.mxu0 0
      %586 = vmatpush1.bf16.msra.mxu0 0
      %587 = vmatprep.subr.bf16.mxu0 0
      %588 = vmatpush1.bf16.msra.mxu0 0
      %589 = vmatprep.subr.bf16.mxu0 0
      %590 = vmatpush1.bf16.msra.mxu0 0
      %591 = vmatprep.subr.bf16.mxu0 0
      %592 = vmatpush1.bf16.msra.mxu0 0
      %593 = vmatprep.subr.bf16.mxu0 0
      %594 = vmatpush1.bf16.msra.mxu0 0
      %595 = vmatprep.subr.bf16.mxu0 0
      %596 = vmatpush1.bf16.msra.mxu0 0
      %597 = vmatprep.subr.bf16.mxu0 0
      %598 = vmatpush1.bf16.msra.mxu0 0
      %599 = vmatprep.mubr.bf16.mxu0 0
      %600 = vmatmul.mubr.bf16.gmra.mrb[0].mxu0 %v565
      %v601 = vpop.f32.mrb[0].mxu0
      %v602 = vadd.f32 0.0, %v601
      %v603 = vpop.f32.mrb[0].mxu0
      %v604 = vpop.f32.mrb[0].mxu0
      %v605 = vpop.f32.mrb[0].mxu0
      %606 = vdwg.mxu0
      %v615 = vunpack.c.l.b16 %v522
      %v616 = vunpack.c.l.b16 %v523
      %v617 = vunpack.c.l.b16 %v524
      %v618 = vunpack.c.l.b16 %v525
      %v619 = vunpack.c.l.b16 %v526
      %v620 = vunpack.c.l.b16 %v527
      %v621 = vunpack.c.l.b16 %v528
      %v622 = vunpack.c.l.b16 %v529
      %v623 = vpack.c.b16 %v616, %v615
      %v624 = vpack.c.b16 %v618, %v617
      %v625 = vpack.c.b16 %v620, %v619
      %v626 = vpack.c.b16 %v622, %v621
      %v632 = vsel %vm563, %v521, 0
      %634 = vmatprep.subr.bf16.mxu0 0
      %635 = vmatpush1.bf16.msra.mxu0 %v623
      %636 = vmatprep.subr.bf16.mxu0 0
      %637 = vmatpush1.bf16.msra.mxu0 %v624
      %638 = vmatprep.subr.bf16.mxu0 0
      %639 = vmatpush1.bf16.msra.mxu0 %v625
      %640 = vmatprep.subr.bf16.mxu0 0
      %641 = vmatpush1.bf16.msra.mxu0 %v626
      %642 = vmatprep.subr.bf16.mxu0 0
      %643 = vmatpush1.bf16.msra.mxu0 0
      %644 = vmatprep.subr.bf16.mxu0 0
      %645 = vmatpush1.bf16.msra.mxu0 0
      %646 = vmatprep.subr.bf16.mxu0 0
      %647 = vmatpush1.bf16.msra.mxu0 0
      %648 = vmatprep.subr.bf16.mxu0 0
      %649 = vmatpush1.bf16.msra.mxu0 0
      %650 = vmatprep.subr.bf16.mxu0 0
      %651 = vmatpush1.bf16.msra.mxu0 0
      %652 = vmatprep.subr.bf16.mxu0 0
      %653 = vmatpush1.bf16.msra.mxu0 0
      %654 = vmatprep.subr.bf16.mxu0 0
      %655 = vmatpush1.bf16.msra.mxu0 0
      %656 = vmatprep.subr.bf16.mxu0 0
      %657 = vmatpush1.bf16.msra.mxu0 0
      %658 = vmatprep.subr.bf16.mxu0 0
      %659 = vmatpush1.bf16.msra.mxu0 0
      %660 = vmatprep.subr.bf16.mxu0 0
      %661 = vmatpush1.bf16.msra.mxu0 0
      %662 = vmatprep.subr.bf16.mxu0 0
      %663 = vmatpush1.bf16.msra.mxu0 0
      %664 = vmatprep.subr.bf16.mxu0 0
      %665 = vmatpush1.bf16.msra.mxu0 0
      %666 = vmatprep.mubr.bf16.mxu0 0
      %667 = vmatmul.mubr.bf16.gmra.mrb[0].mxu0 %v632
      %v668 = vpop.f32.mrb[0].mxu0
      %v669 = vadd.f32 %v602, %v668
      %v670 = vpop.f32.mrb[0].mxu0
      %v671 = vpop.f32.mrb[0].mxu0
      %v672 = vpop.f32.mrb[0].mxu0
      %673 = vdwg.mxu0
      %v674 = vld [vmem:[%s6] sm:$0x1]
      %v676 = vlaneseq
      %v677 = vshrl.u32 %v676, 7
      %v678 = vsub.s32 0, %v677
      %v679 = vrot.slane %v674, %v678
      %v681 = vadd.f32 %v669, %v679
      %v682 = vmax.f32 %v681, 0.0
      %v683 = vpack.c.bf16 %v682, %v682
      %v684 = vld [vmem:[%s7] sm:$0xf]
      %v685 = vld [vmem:[%s7 + $0x4] sm:$0xf]
      %v686 = vld [vmem:[%s7 + $0x8] sm:$0xf]
      %v687 = vld [vmem:[%s7 + $0xc] sm:$0xf]
      %v688 = vld [vmem:[%s7 + $0x10] sm:$0xf]
      %v689 = vld [vmem:[%s7 + $0x14] sm:$0xf]
      %v690 = vld [vmem:[%s7 + $0x18] sm:$0xf]
      %v691 = vld [vmem:[%s7 + $0x1c] sm:$0xf]
      %v692 = vld [vmem:[%s7 + $0x20] sm:$0xf]
      %v693 = vld [vmem:[%s7 + $0x24] sm:$0xf]
      %v694 = vld [vmem:[%s7 + $0x28] sm:$0xf]
      %v695 = vld [vmem:[%s7 + $0x2c] sm:$0xf]
      %v696 = vld [vmem:[%s7 + $0x30] sm:$0xf]
      %v697 = vld [vmem:[%s7 + $0x34] sm:$0xf]
      %v698 = vld [vmem:[%s7 + $0x38] sm:$0xf]
      %v699 = vld [vmem:[%s7 + $0x3c] sm:$0xf]
      %v700 = vld [vmem:[%s8] sm:$0x1]
      %v702 = vlaneseq
      %v703 = vshrl.u32 %v702, 7
      %v704 = vsub.s32 0, %v703
      %v705 = vrot.slane %v700, %v704
      %v723 = vunpack.c.l.b16 %v684
      %v724 = vunpack.c.l.b16 %v685
      %v725 = vunpack.c.l.b16 %v686
      %v726 = vunpack.c.l.b16 %v687
      %v727 = vunpack.c.l.b16 %v688
      %v728 = vunpack.c.l.b16 %v689
      %v729 = vunpack.c.l.b16 %v690
      %v730 = vunpack.c.l.b16 %v691
      %v731 = vunpack.c.l.b16 %v692
      %v732 = vunpack.c.l.b16 %v693
      %v733 = vunpack.c.l.b16 %v694
      %v734 = vunpack.c.l.b16 %v695
      %v735 = vunpack.c.l.b16 %v696
      %v736 = vunpack.c.l.b16 %v697
      %v737 = vunpack.c.l.b16 %v698
      %v738 = vunpack.c.l.b16 %v699
      %v739 = vpack.c.b16 %v724, %v723
      %v740 = vpack.c.b16 %v726, %v725
      %v741 = vpack.c.b16 %v728, %v727
      %v742 = vpack.c.b16 %v730, %v729
      %v743 = vpack.c.b16 %v732, %v731
      %v744 = vpack.c.b16 %v734, %v733
      %v745 = vpack.c.b16 %v736, %v735
      %v746 = vpack.c.b16 %v738, %v737
      %755 = vmatprep.subr.bf16.mxu0 0
      %756 = vmatpush1.bf16.msra.mxu0 %v739
      %757 = vmatprep.subr.bf16.mxu0 0
      %758 = vmatpush1.bf16.msra.mxu0 %v740
      %759 = vmatprep.subr.bf16.mxu0 0
      %760 = vmatpush1.bf16.msra.mxu0 %v741
      %761 = vmatprep.subr.bf16.mxu0 0
      %762 = vmatpush1.bf16.msra.mxu0 %v742
      %763 = vmatprep.subr.bf16.mxu0 0
      %764 = vmatpush1.bf16.msra.mxu0 %v743
      %765 = vmatprep.subr.bf16.mxu0 0
      %766 = vmatpush1.bf16.msra.mxu0 %v744
      %767 = vmatprep.subr.bf16.mxu0 0
      %768 = vmatpush1.bf16.msra.mxu0 %v745
      %769 = vmatprep.subr.bf16.mxu0 0
      %770 = vmatpush1.bf16.msra.mxu0 %v746
      %771 = vmatprep.subr.bf16.mxu0 0
      %772 = vmatpush1.bf16.msra.mxu0 0
      %773 = vmatprep.subr.bf16.mxu0 0
      %774 = vmatpush1.bf16.msra.mxu0 0
      %775 = vmatprep.subr.bf16.mxu0 0
      %776 = vmatpush1.bf16.msra.mxu0 0
      %777 = vmatprep.subr.bf16.mxu0 0
      %778 = vmatpush1.bf16.msra.mxu0 0
      %779 = vmatprep.subr.bf16.mxu0 0
      %780 = vmatpush1.bf16.msra.mxu0 0
      %781 = vmatprep.subr.bf16.mxu0 0
      %782 = vmatpush1.bf16.msra.mxu0 0
      %783 = vmatprep.subr.bf16.mxu0 0
      %784 = vmatpush1.bf16.msra.mxu0 0
      %785 = vmatprep.subr.bf16.mxu0 0
      %786 = vmatpush1.bf16.msra.mxu0 0
      %787 = vmatprep.mubr.bf16.mxu0 0
      %788 = vmatmul.mubr.bf16.gmra.mrb[0].mxu0 %v683
      %v789 = vpop.f32.mrb[0].mxu0
      %v790 = vadd.f32 %v705, %v789
      %v791 = vpop.f32.mrb[0].mxu0
      %v792 = vpop.f32.mrb[0].mxu0
      %v793 = vpop.f32.mrb[0].mxu0
      %794 = vdwg.mxu0
      %v795 = vmax.f32 %v790, 0.0
      %v796 = vpack.c.bf16 %v795, %v795
      %v797 = vld [vmem:[%s9] sm:$0xf]
      %v798 = vld [vmem:[%s9 + $0x4] sm:$0xf]
      %v799 = vld [vmem:[%s9 + $0x8] sm:$0xf]
      %v800 = vld [vmem:[%s9 + $0xc] sm:$0xf]
      %v801 = vld [vmem:[%s9 + $0x10] sm:$0xf]
      %v802 = vld [vmem:[%s9 + $0x14] sm:$0xf]
      %v803 = vld [vmem:[%s9 + $0x18] sm:$0xf]
      %v804 = vld [vmem:[%s9 + $0x1c] sm:$0xf]
      %v805 = vld [vmem:[%s10] sm:$0x1]
      %v807 = vlaneseq
      %v808 = vshrl.u32 %v807, 7
      %v809 = vsub.s32 0, %v808
      %v810 = vrot.slane %v805, %v809
      %v820 = vunpack.c.l.b16 %v797
      %v821 = vunpack.c.l.b16 %v798
      %v822 = vunpack.c.l.b16 %v799
      %v823 = vunpack.c.l.b16 %v800
      %v824 = vunpack.c.l.b16 %v801
      %v825 = vunpack.c.l.b16 %v802
      %v826 = vunpack.c.l.b16 %v803
      %v827 = vunpack.c.l.b16 %v804
      %v828 = vpack.c.b16 %v821, %v820
      %v829 = vpack.c.b16 %v823, %v822
      %v830 = vpack.c.b16 %v825, %v824
      %v831 = vpack.c.b16 %v827, %v826
      %v837 = vsel %vm563, %v796, 0
      %839 = vmatprep.subr.bf16.mxu0 0
      %840 = vmatpush1.bf16.msra.mxu0 %v828
      %841 = vmatprep.subr.bf16.mxu0 0
      %842 = vmatpush1.bf16.msra.mxu0 %v829
      %843 = vmatprep.subr.bf16.mxu0 0
      %844 = vmatpush1.bf16.msra.mxu0 %v830
      %845 = vmatprep.subr.bf16.mxu0 0
      %846 = vmatpush1.bf16.msra.mxu0 %v831
      %847 = vmatprep.subr.bf16.mxu0 0
      %848 = vmatpush1.bf16.msra.mxu0 0
      %849 = vmatprep.subr.bf16.mxu0 0
      %850 = vmatpush1.bf16.msra.mxu0 0
      %851 = vmatprep.subr.bf16.mxu0 0
      %852 = vmatpush1.bf16.msra.mxu0 0
      %853 = vmatprep.subr.bf16.mxu0 0
      %854 = vmatpush1.bf16.msra.mxu0 0
      %855 = vmatprep.subr.bf16.mxu0 0
      %856 = vmatpush1.bf16.msra.mxu0 0
      %857 = vmatprep.subr.bf16.mxu0 0
      %858 = vmatpush1.bf16.msra.mxu0 0
      %859 = vmatprep.subr.bf16.mxu0 0
      %860 = vmatpush1.bf16.msra.mxu0 0
      %861 = vmatprep.subr.bf16.mxu0 0
      %862 = vmatpush1.bf16.msra.mxu0 0
      %863 = vmatprep.subr.bf16.mxu0 0
      %864 = vmatpush1.bf16.msra.mxu0 0
      %865 = vmatprep.subr.bf16.mxu0 0
      %866 = vmatpush1.bf16.msra.mxu0 0
      %867 = vmatprep.subr.bf16.mxu0 0
      %868 = vmatpush1.bf16.msra.mxu0 0
      %869 = vmatprep.subr.bf16.mxu0 0
      %870 = vmatpush1.bf16.msra.mxu0 0
      %871 = vmatprep.mubr.bf16.mxu0 0
      %872 = vmatmul.mubr.bf16.gmra.mrb[0].mxu0 %v837
      %v873 = vpop.f32.mrb[0].mxu0
      %v874 = vadd.f32 %v810, %v873
      %v875 = vpop.f32.mrb[0].mxu0
      %v876 = vpop.f32.mrb[0].mxu0
      %v877 = vpop.f32.mrb[0].mxu0
      %878 = vdwg.mxu0
      %v879 = vmax.f32 %v874, 0.0
      %v880 = vld [vmem:[%s11] sm:$0x1]
      %v882 = vlaneseq
      %v883 = vshrl.u32 %v882, 7
      %v884 = vsub.s32 0, %v883
      %v885 = vrot.slane %v880, %v884
      %v887 = vmul.f32 %v520, %v885
      %v888 = vld [vmem:[%s12] sm:$0x1]
      %v890 = vlaneseq
      %v891 = vshrl.u32 %v890, 7
      %v892 = vsub.s32 0, %v891
      %v893 = vrot.slane %v888, %v892
      %v895 = vmul.f32 %v879, %v893
      %v896 = vadd.f32 %v887, %v895
      %vm897 = vcmask 261120
      %v898 = vsel %vm897, %v896, 0.0
      %899 = vadd.xlane.f32.xlu0 %v898
      %v900 = vpop.xlane.xlu0 %899
      %s901 = sld [smem:[#allocation2]]
      %v902 = vstv %s901
      %v903 = vadd.f32 %v900, %v902
      %vm904 = vcmask 7168
      %905 = vst.msk [vmem:[%s514] sm:$0xff] %vm904, %v903
      %p906 = scmp.lt.s32.totalorder %s26, 1
      %s907 = scalar_select %p906, %s26, 1
      %s908 = smul.addr %s907, 8
      %s909 = scalar_lea.vmem %s14, %s908
      // Predicated region
      $region77: #{tpu_custom_call.1} parent=75 // pred_check
        %p910 = pneg %p358
      $region78: #{tpu_custom_call.1} parent=75 // pred_check_branch
        %912 = sbr.rel (%p910) target = $region80
      $region79: #{tpu_custom_call.1} parent=75 // pred_region
        _
      $region80: #{tpu_custom_call.1} parent=75 // pred_fallthru
        _
    $region76: #{tpu_custom_call.1} parent=5 // pred_fallthru
      _
    %p913 = scmp.le.s32.totalorder 2, %s21
    // Predicated region
    $region81: #{tpu_custom_call.1} parent=5 // pred_check
      %p914 = pneg %p913
    $region82: #{tpu_custom_call.1} parent=5 // pred_check_branch
      %916 = sbr.rel (%p914) target = $region84
    $region83: #{tpu_custom_call.1} parent=5 // pred_region
      %s917 = ssub.s32 %s21, 2
      // Predicated region
      $region85: #{tpu_custom_call.1} parent=83 // pred_check
        %p918 = pneg %p364
      $region86: #{tpu_custom_call.1} parent=83 // pred_check_branch
        %920 = sbr.rel (%p918) target = $region88
      $region87: #{tpu_custom_call.1} parent=83 // pred_region
        %p921 = scmp.lt.s32.totalorder %s27, 1
        %s922 = scalar_select %p921, %s27, 1
        %s923 = smul.addr %s922, 8
        %s924 = scalar_lea.vmem %s14, %s923
      $region88: #{tpu_custom_call.1} parent=83 // pred_fallthru
        _
    $region84: #{tpu_custom_call.1} parent=5 // pred_fallthru
      _
  $region6: #{tpu_custom_call.1} parent=0 // loop_footer
    %s25 = sadd.s32 1, %s21
  $region7: #{tpu_custom_call.1} parent=0 // loop_footer_branch
    %20 = sbr.rel target = $region3
  $region8: #{tpu_custom_call.1} parent=0 // loop_exit
    _

</llo_original>
